<compile_context>
chip_gen: v7x
topology: tpu7x:2x2x1
jax: 0.10.0
libtpu: 0.0.40
codegen_flags: <defaults>
</compile_context>

<pallas_src>
import functools

import jax
import jax.numpy as jnp
from jax.experimental import pallas as pl
from jax.experimental.pallas import tpu as pltpu

TAYLOR_ORDER = 4
HIDDEN_SIZE = 32            # hidden_size (small for the demo)
NUM_HIDDEN_LAYERS = 3       # num_hidden_layers (small for the demo)
IN_DIM = 2                  # raw input has 2 features
INIT_SIZE = IN_DIM * (TAYLOR_ORDER + 1)   # = 10, width after Taylor expansion
LEAKY_SLOPE = 0.01          # nn.LeakyReLU default negative_slope
MAX_BLOCK_B = 2048          # max batch tile on the lane axis (multiple of 128)


def _round_up(n, m):
    return ((n + m - 1) // m) * m


def _choose_block_b(batch, max_block=MAX_BLOCK_B):
    """Batch tile: as big as possible, but keep >=2 grid steps when we can
    (so v7x's two TensorCores both get work via dimension_semantics)."""
    b128 = _round_up(batch, 128)
    if b128 <= 2 * 128:
        return 128
    half = _round_up(pl.cdiv(b128, 2), 128)
    return min(max_block, half)


def taylor_kernel(xT_ref, w_tay_ref, w_cur0_ref, w_pc_ref, w_out_pc_ref, o_ref,
                  *, taylor_order, num_hidden_layers, hidden_size):
    H = hidden_size
    L = num_hidden_layers

    xT = xT_ref[...]                                   # [2, TB] (batch on lanes)

    # --- Taylor features: [x, x^2, ..., x^order, 1] stacked on sublanes -----
    # (x^1 was folded into the x weight columns at pack time; the trailing
    #  ones-row carries all the biases.)
    series = [xT]
    p = xT
    for _ in range(taylor_order - 1):
        p = p * xT
        series.append(p)
    ones = jnp.ones((1, xT.shape[1]), dtype=xT.dtype)
    taylorT = jnp.concatenate(series + [ones], axis=0)  # [2*order+1, TB]

    # --- One hoisted MXU op for every taylor + bias contribution ------------
    # rows 0:H                -> input layer  (w_in @ taylor^T + b_in)
    # rows H+l*H : H+(l+1)*H  -> hidden layer l taylor + bias term
    # row  H+L*H              -> output layer taylor + bias term
    tay_proj = jnp.dot(w_tay_ref[...], taylorT,
                       preferred_element_type=jnp.float32)   # [(L+1)H+1, TB]

    cur = tay_proj[0:H, :]                             # inLayer output (no act)
    prev = cur                                         # placeholder (unused at l=0)

    for l in range(L):
        z = tay_proj[H + l * H:H + (l + 1) * H, :]
        if l == 0:
            # layer 0 has no `prev` input in the PyTorch model
            z = z + jnp.dot(w_cur0_ref[...], cur,
                            preferred_element_type=jnp.float32)
        else:
            pc = jnp.concatenate([prev, cur], axis=0)  # [2H, TB], 8-aligned stack
            z = z + jnp.dot(w_pc_ref[l - 1], pc,
                            preferred_element_type=jnp.float32)
        prev = cur
        cur = jnp.where(z >= 0, z, LEAKY_SLOPE * z)    # LeakyReLU

    pc = jnp.concatenate([prev, cur], axis=0)          # [2H, TB]
    y = (tay_proj[H + L * H:H + L * H + 1, :]
         + jnp.dot(w_out_pc_ref[...], pc, preferred_element_type=jnp.float32))
    e = jnp.exp(-y)                                    # exp on EUP
    # exact reciprocal keeps the result tight vs the f32 reference; flip to
    # approx=True for the (tiny) EUP-only win if ~1e-4 rel error is acceptable.
    o_ref[...] = pl.reciprocal(1.0 + e, approx=False)  # sigmoid


def init_params(key, hidden_size, num_hidden_layers, init_size):
    """PyTorch-style per-layer params: weight [out, in], bias [out]."""
    H, F, L = hidden_size, init_size, num_hidden_layers
    keys = jax.random.split(key, 2 * (L + 2))

    def linear(kw, kb, fan_in, fan_out):
        bound = float(fan_in) ** -0.5
        w = jax.random.uniform(kw, (fan_out, fan_in), jnp.float32, -bound, bound)
        b = jax.random.uniform(kb, (fan_out,), jnp.float32, -bound, bound)
        return w, b

    w_in, b_in = linear(keys[0], keys[1], F, H)
    hidden = []
    for i in range(L):
        fan_in = (2 * H + F) if i > 0 else (H + F)
        hidden.append(linear(keys[2 + 2 * i], keys[3 + 2 * i], fan_in, H))
    w_out, b_out = linear(keys[-2], keys[-1], 2 * H + F, 1)
    return (w_in, b_in), hidden, (w_out, b_out)


def pack_params(params, hidden_size, num_hidden_layers, init_size, in_dim):
    """Split weights into (prev|cur) / taylor blocks, fold x & x^1 columns,
    fold every bias in as an extra 'ones feature' column, and merge prev+cur
    weights into single [H, 2H] matrices."""
    (w_in, b_in), hidden, (w_out, b_out) = params
    H, F, D = hidden_size, init_size, in_dim
    L = num_hidden_layers

    def fold_dup(w_tay):   # [out, F] -> [out, F-D]: sum the x and x^1 columns
        return jnp.concatenate([w_tay[:, :D] + w_tay[:, D:2 * D],
                                w_tay[:, 2 * D:]], axis=1)

    def tay_row(w_tay, b):  # fold dup columns, append bias as a ones-feature col
        return jnp.concatenate([fold_dup(w_tay), b.reshape(-1, 1)], axis=1)

    w_tay_rows = [tay_row(w_in, b_in)]                 # [H, F-D+1]
    w_cur0 = None
    w_pc = []
    for i, (w, b) in enumerate(hidden):
        if i == 0:                                     # fan_in = H + F: [cur|tay]
            w_cur0 = w[:, 0:H]
            w_tay_rows.append(tay_row(w[:, H:H + F], b))
        else:                                          # fan_in = 2H+F: [prev|cur|tay]
            w_pc.append(w[:, 0:2 * H])
            w_tay_rows.append(tay_row(w[:, 2 * H:2 * H + F], b))
    w_tay_rows.append(tay_row(w_out[:, 2 * H:2 * H + F], b_out))   # [1, F-D+1]

    if not w_pc:   # degenerate L == 1: dummy block, never read in the kernel
        w_pc = [jnp.zeros((H, 2 * H), jnp.float32)]

    return dict(
        w_tay_all=jnp.concatenate(w_tay_rows, axis=0),  # [(L+1)H+1, F-D+1]
        w_cur0=w_cur0,                                  # [H, H]
        w_pc=jnp.stack(w_pc),                           # [max(L-1,1), H, 2H]
        w_out_pc=w_out[:, 0:2 * H],                     # [1, 2H]
    )


def taylor_forward(x, params, *, hidden_size=HIDDEN_SIZE,
                   num_hidden_layers=NUM_HIDDEN_LAYERS,
                   taylor_order=TAYLOR_ORDER, max_block_b=MAX_BLOCK_B):
    B, D = x.shape
    H, L = hidden_size, num_hidden_layers
    F = D * (taylor_order + 1)
    Fb = D * taylor_order + 1                           # folded taylor + ones col
    n_tay_rows = (L + 1) * H + 1
    n_pc = max(L - 1, 1)

    kp = pack_params(params, H, L, F, D)

    block_b = _choose_block_b(B, max_block_b)
    B_pad = _round_up(B, block_b)

    # Put batch on the lane axis; pad to a multiple of block_b.
    # TODO(synk): at very large B, fuse the transpose/pad into the kernel
    # (read [block_b, D] tiles directly) to avoid the extra HBM round trip.
    xT = x.T
    if B_pad != B:
        xT = jnp.pad(xT, ((0, 0), (0, B_pad - B)))

    kernel = functools.partial(taylor_kernel,
                               taylor_order=taylor_order,
                               num_hidden_layers=num_hidden_layers,
                               hidden_size=hidden_size)

    const2 = lambda i: (0, 0)
    const3 = lambda i: (0, 0, 0)

    out = pl.pallas_call(
        kernel,
        out_shape=jax.ShapeDtypeStruct((1, B_pad), jnp.float32),
        grid_spec=pl.GridSpec(
            grid=(B_pad // block_b,),
            in_specs=[
                pl.BlockSpec((D, block_b), lambda i: (0, i)),   # x^T tile
                pl.BlockSpec((n_tay_rows, Fb), const2),         # w_tay_all (+biases)
                pl.BlockSpec((H, H), const2),                   # w_cur0 (layer 0)
                pl.BlockSpec((n_pc, H, 2 * H), const3),         # merged prev|cur
                pl.BlockSpec((1, 2 * H), const2),               # merged output w
            ],
            out_specs=pl.BlockSpec((1, block_b), lambda i: (0, i)),  # lane-dense
        ),
        compiler_params=pltpu.CompilerParams(
            dimension_semantics=("parallel",)),
    )(xT, kp["w_tay_all"], kp["w_cur0"], kp["w_pc"], kp["w_out_pc"])

    return out[:, :B].T                                  # [B, 1]


def taylor_forward_ref(x, params, *, taylor_order=TAYLOR_ORDER):
    """Pure-JAX reference mirroring the PyTorch forward exactly."""
    (w_in, b_in), hidden, (w_out, b_out) = params
    series = [x]
    for _ in range(taylor_order):
        series.append(series[-1] * x) if len(series) > 1 else series.append(x)
    # rebuild exactly as PyTorch: [x, x**1, x**2, ..., x**order]
    series = [x] + [x ** n for n in range(1, taylor_order + 1)]
    taylor = jnp.concatenate(series, axis=1)             # [B, F]
    cur = taylor @ w_in.T + b_in
    prev = jnp.zeros((x.shape[0], 0), jnp.float32)       # torch.tensor([])
    for (w, b) in hidden:
        combined = jnp.concatenate([prev, cur, taylor], axis=1)
        z = combined @ w.T + b
        prev = cur
        cur = jnp.where(z >= 0, z, LEAKY_SLOPE * z)
    combined = jnp.concatenate([prev, cur, taylor], axis=1)
    y = combined @ w_out.T + b_out
    return 1.0 / (1.0 + jnp.exp(-y))


if __name__ == "__main__":
    key = jax.random.PRNGKey(0)
    kx, kp_key = jax.random.split(key)

    B = 300                      # deliberately not a multiple of 128 (padded)
    x = jax.random.normal(kx, (B, IN_DIM), jnp.float32)

    params = init_params(kp_key, HIDDEN_SIZE, NUM_HIDDEN_LAYERS, INIT_SIZE)

    out = taylor_forward(x, params)
    out = jax.block_until_ready(out)

    ref = taylor_forward_ref(x, params)
    assert out.shape == (B, 1), out.shape
    max_err = float(jnp.max(jnp.abs(out - ref)))
    assert max_err < 1e-3, f"max abs err vs reference: {max_err}"

    print("KERNEL_OK")
</pallas_src>

<mosaic_0001>
module attributes {stable_mosaic.version = 11 : i64} {
  func.func @taylor_kernel(%arg0: i32, %arg1: memref<2x256xf32, #tpu.memory_space<vmem>>, %arg2: memref<129x9xf32, #tpu.memory_space<vmem>>, %arg3: memref<32x32xf32, #tpu.memory_space<vmem>>, %arg4: memref<2x32x64xf32, #tpu.memory_space<vmem>>, %arg5: memref<1x64xf32, #tpu.memory_space<vmem>>, %arg6: memref<1x256xf32, #tpu.memory_space<vmem>>) attributes {dimension_semantics = [#tpu.dimension_semantics<parallel>], iteration_bounds = array<i64: 2>, scalar_prefetch = 0 : i64, scratch_operands = 0 : i64, tpu.core_type = #tpu.core_type<tc>, window_params = [{transform_indices = @transform_0, window_bounds = array<i64: 2, 256>}, {pipeline_mode = #tpu.pipeline_mode<synchronous>, transform_indices = @transform_1, window_bounds = array<i64: 129, 9>}, {pipeline_mode = #tpu.pipeline_mode<synchronous>, transform_indices = @transform_2, window_bounds = array<i64: 32, 32>}, {pipeline_mode = #tpu.pipeline_mode<synchronous>, transform_indices = @transform_3, window_bounds = array<i64: 2, 32, 64>}, {pipeline_mode = #tpu.pipeline_mode<synchronous>, transform_indices = @transform_4, window_bounds = array<i64: 1, 64>}, {transform_indices = @transform_5, window_bounds = array<i64: 1, 256>}]} {
    %c0 = arith.constant 0 : index
    %c0_0 = arith.constant 0 : index
    %0 = vector.load %arg1[%c0, %c0_0] : memref<2x256xf32, #tpu.memory_space<vmem>>, vector<2x256xf32>
    %1 = arith.mulf %0, %0 : vector<2x256xf32>
    %2 = arith.mulf %1, %0 : vector<2x256xf32>
    %3 = arith.mulf %2, %0 : vector<2x256xf32>
    %cst = arith.constant 1.000000e+00 : f32
    %4 = vector.broadcast %cst : f32 to vector<1x256xf32>
    %5 = tpu.concatenate %0, %1, %2, %3, %4 in 0 : vector<2x256xf32>, vector<2x256xf32>, vector<2x256xf32>, vector<2x256xf32>, vector<1x256xf32> -> vector<9x256xf32>
    %c0_1 = arith.constant 0 : index
    %c0_2 = arith.constant 0 : index
    %6 = vector.load %arg2[%c0_1, %c0_2] : memref<129x9xf32, #tpu.memory_space<vmem>>, vector<129x9xf32>
    %cst_3 = arith.constant dense<0.000000e+00> : vector<129x256xf32>
    %7 = tpu.matmul %6, %5, %cst_3 {dimension_numbers = #tpu.dot_dimension_numbers<[1], [0], [0], [1], [0, 0, 1, 1], [], []>} : vector<129x9xf32>, vector<9x256xf32>, vector<129x256xf32> -> vector<129x256xf32>
    %8 = vector.extract_strided_slice %7 {offsets = [0, 0], sizes = [32, 256], strides = [1, 1]} : vector<129x256xf32> to vector<32x256xf32>
    %9 = vector.extract_strided_slice %7 {offsets = [32, 0], sizes = [32, 256], strides = [1, 1]} : vector<129x256xf32> to vector<32x256xf32>
    %c0_4 = arith.constant 0 : index
    %c0_5 = arith.constant 0 : index
    %10 = vector.load %arg3[%c0_4, %c0_5] : memref<32x32xf32, #tpu.memory_space<vmem>>, vector<32x32xf32>
    %cst_6 = arith.constant dense<0.000000e+00> : vector<32x256xf32>
    %11 = tpu.matmul %10, %8, %cst_6 {dimension_numbers = #tpu.dot_dimension_numbers<[1], [0], [0], [1], [0, 0, 1, 1], [], []>} : vector<32x32xf32>, vector<32x256xf32>, vector<32x256xf32> -> vector<32x256xf32>
    %12 = arith.addf %9, %11 : vector<32x256xf32>
    %cst_7 = arith.constant 0.000000e+00 : f32
    %13 = vector.broadcast %cst_7 : f32 to vector<32x256xf32>
    %14 = arith.cmpf oge, %12, %13 : vector<32x256xf32>
    %cst_8 = arith.constant 0.00999999977 : f32
    %15 = vector.broadcast %cst_8 : f32 to vector<32x256xf32>
    %16 = arith.mulf %15, %12 : vector<32x256xf32>
    %17 = arith.select %14, %12, %16 : vector<32x256xi1>, vector<32x256xf32>
    %18 = vector.extract_strided_slice %7 {offsets = [64, 0], sizes = [32, 256], strides = [1, 1]} : vector<129x256xf32> to vector<32x256xf32>
    %19 = tpu.concatenate %8, %17 in 0 : vector<32x256xf32>, vector<32x256xf32> -> vector<64x256xf32>
    %c0_9 = arith.constant 0 : index
    %c0_10 = arith.constant 0 : index
    %c0_11 = arith.constant 0 : index
    %20 = vector.load %arg4[%c0_9, %c0_10, %c0_11] : memref<2x32x64xf32, #tpu.memory_space<vmem>>, vector<1x32x64xf32>
    %21 = vector.shape_cast %20 : vector<1x32x64xf32> to vector<32x64xf32>
    %cst_12 = arith.constant dense<0.000000e+00> : vector<32x256xf32>
    %22 = tpu.matmul %21, %19, %cst_12 {dimension_numbers = #tpu.dot_dimension_numbers<[1], [0], [0], [1], [0, 0, 1, 1], [], []>} : vector<32x64xf32>, vector<64x256xf32>, vector<32x256xf32> -> vector<32x256xf32>
    %23 = arith.addf %18, %22 : vector<32x256xf32>
    %cst_13 = arith.constant 0.000000e+00 : f32
    %24 = vector.broadcast %cst_13 : f32 to vector<32x256xf32>
    %25 = arith.cmpf oge, %23, %24 : vector<32x256xf32>
    %cst_14 = arith.constant 0.00999999977 : f32
    %26 = vector.broadcast %cst_14 : f32 to vector<32x256xf32>
    %27 = arith.mulf %26, %23 : vector<32x256xf32>
    %28 = arith.select %25, %23, %27 : vector<32x256xi1>, vector<32x256xf32>
    %29 = vector.extract_strided_slice %7 {offsets = [96, 0], sizes = [32, 256], strides = [1, 1]} : vector<129x256xf32> to vector<32x256xf32>
    %30 = tpu.concatenate %17, %28 in 0 : vector<32x256xf32>, vector<32x256xf32> -> vector<64x256xf32>
    %c1 = arith.constant 1 : index
    %c0_15 = arith.constant 0 : index
    %c0_16 = arith.constant 0 : index
    %31 = vector.load %arg4[%c1, %c0_15, %c0_16] : memref<2x32x64xf32, #tpu.memory_space<vmem>>, vector<1x32x64xf32>
    %32 = vector.shape_cast %31 : vector<1x32x64xf32> to vector<32x64xf32>
    %cst_17 = arith.constant dense<0.000000e+00> : vector<32x256xf32>
    %33 = tpu.matmul %32, %30, %cst_17 {dimension_numbers = #tpu.dot_dimension_numbers<[1], [0], [0], [1], [0, 0, 1, 1], [], []>} : vector<32x64xf32>, vector<64x256xf32>, vector<32x256xf32> -> vector<32x256xf32>
    %34 = arith.addf %29, %33 : vector<32x256xf32>
    %cst_18 = arith.constant 0.000000e+00 : f32
    %35 = vector.broadcast %cst_18 : f32 to vector<32x256xf32>
    %36 = arith.cmpf oge, %34, %35 : vector<32x256xf32>
    %cst_19 = arith.constant 0.00999999977 : f32
    %37 = vector.broadcast %cst_19 : f32 to vector<32x256xf32>
    %38 = arith.mulf %37, %34 : vector<32x256xf32>
    %39 = arith.select %36, %34, %38 : vector<32x256xi1>, vector<32x256xf32>
    %40 = tpu.concatenate %28, %39 in 0 : vector<32x256xf32>, vector<32x256xf32> -> vector<64x256xf32>
    %41 = vector.extract_strided_slice %7 {offsets = [128, 0], sizes = [1, 256], strides = [1, 1]} : vector<129x256xf32> to vector<1x256xf32>
    %c0_20 = arith.constant 0 : index
    %c0_21 = arith.constant 0 : index
    %42 = vector.load %arg5[%c0_20, %c0_21] : memref<1x64xf32, #tpu.memory_space<vmem>>, vector<1x64xf32>
    %cst_22 = arith.constant dense<0.000000e+00> : vector<1x256xf32>
    %43 = tpu.matmul %42, %40, %cst_22 {dimension_numbers = #tpu.dot_dimension_numbers<[1], [0], [0], [1], [0, 0, 1, 1], [], []>} : vector<1x64xf32>, vector<64x256xf32>, vector<1x256xf32> -> vector<1x256xf32>
    %44 = arith.addf %41, %43 : vector<1x256xf32>
    %cst_23 = arith.constant 0.000000e+00 : f32
    %45 = vector.broadcast %cst_23 : f32 to vector<1x256xf32>
    %46 = arith.subf %45, %44 : vector<1x256xf32>
    %47 = math.exp %46 : vector<1x256xf32>
    %cst_24 = arith.constant 1.000000e+00 : f32
    %48 = vector.broadcast %cst_24 : f32 to vector<1x256xf32>
    %49 = arith.addf %48, %47 : vector<1x256xf32>
    %50 = tpu.reciprocal %49 : vector<1x256xf32> -> vector<1x256xf32>
    %c0_25 = arith.constant 0 : index
    %c0_26 = arith.constant 0 : index
    %51 = vector.load %arg6[%c0_25, %c0_26] : memref<1x256xf32, #tpu.memory_space<vmem>>, vector<1x256xf32>
    tpu.vector_store %arg6[%c0_25, %c0_26], %50 {strides = array<i32>} : memref<1x256xf32, #tpu.memory_space<vmem>>, vector<1x256xf32>,
    return
  }
  func.func @transform_0(%arg0: i32) -> (i32, i32) {
    %c0_i32 = arith.constant 0 : i32
    %c0_i32_0 = arith.constant 0 : i32
    return %c0_i32, %arg0 : i32, i32
  }
  func.func @transform_1(%arg0: i32) -> (i32, i32) {
    %c0_i32 = arith.constant 0 : i32
    %c0_i32_0 = arith.constant 0 : i32
    %c0_i32_1 = arith.constant 0 : i32
    return %c0_i32, %c0_i32_0 : i32, i32
  }
  func.func @transform_2(%arg0: i32) -> (i32, i32) {
    %c0_i32 = arith.constant 0 : i32
    %c0_i32_0 = arith.constant 0 : i32
    %c0_i32_1 = arith.constant 0 : i32
    return %c0_i32, %c0_i32_0 : i32, i32
  }
  func.func @transform_3(%arg0: i32) -> (i32, i32, i32) {
    %c0_i32 = arith.constant 0 : i32
    %c0_i32_0 = arith.constant 0 : i32
    %c0_i32_1 = arith.constant 0 : i32
    %c0_i32_2 = arith.constant 0 : i32
    return %c0_i32, %c0_i32_0, %c0_i32_1 : i32, i32, i32
  }
  func.func @transform_4(%arg0: i32) -> (i32, i32) {
    %c0_i32 = arith.constant 0 : i32
    %c0_i32_0 = arith.constant 0 : i32
    %c0_i32_1 = arith.constant 0 : i32
    return %c0_i32, %c0_i32_0 : i32, i32
  }
  func.func @transform_5(%arg0: i32) -> (i32, i32) {
    %c0_i32 = arith.constant 0 : i32
    %c0_i32_0 = arith.constant 0 : i32
    return %c0_i32, %arg0 : i32, i32
  }
}

</mosaic_0001>

<llo_original>
// kernel: tpu_custom_call.1
$region0: #{tpu_custom_call.1}
  #allocation0 [shape = 'u32[]', space=smem, size = 0x4, offset = 0x4, fixed_abs, tag = 'smem constant byte address 0x4 - core index']
  #allocation1 [shape = 'u32[144,128]{1,0:T(1,128)}', space=vmem, size = 0x12000, scoped, tag = 'internal scratch']
  %s0 = inlined_call_operand.vmem [shape: f32[2,512], index: 0, kind: input, shape index: {}]
  %s1 = inlined_call_operand.vmem [shape: f32[129,9], index: 1, kind: input, shape index: {}]
  %s2 = inlined_call_operand.vmem [shape: f32[32,32], index: 2, kind: input, shape index: {}]
  %s3 = inlined_call_operand.vmem [shape: f32[2,32,64], index: 3, kind: input, shape index: {}]
  %s4 = inlined_call_operand.vmem [shape: f32[1,64], index: 4, kind: input, shape index: {}]
  %s5 = inlined_call_operand.hbm [shape: f32[1,512], index: 5, kind: output, shape index: {}]
  %s6 = sld [smem:[#allocation0]]
  $region53: #{tpu_custom_call.1} parent=0
    _
  %s8 = ssub.s32 1, %s6
  %s9 = scalar_select 0, %s8, %s6
  $region1: #{tpu_custom_call.1} parent=0
    #allocation2 [shape = 'u8[2048]{0}', space=vmem, size = 0x800, scoped, tag = 'output window, operand 0']
    #allocation3 [shape = 's32[2]{0}', space=sflag, size = 0x8, scoped, tag = 'scoped memory for tpu_custom_call.1']
    %10 = vsyncpa [#allocation3], 0
    %s11 = scalar_lea.sflag [#allocation3], 1
    %12 = vsyncpa %s11, 0
    loop: start=0, step=1, limit=4
    $region2: #{tpu_custom_call.1} parent=1 // loop_pre_header
      _
    $region3: #{tpu_custom_call.1} parent=1 // loop_header
      %s14 = sphi 0, %s18
      %p15 = scmp.ge.s32.totalorder %s14, 4
      %s24 = sphi 0, %s26
      %s27 = sphi 0, %s24
      %s28 = sphi 0, %s27
      %s44 = sphi 0, %s28
      %s48 = sphi 0, %s48
      %s50 = sphi 0, %s48
      %s51 = sphi 0, %s50
      %s65 = sphi 0, %s51
      %s69 = sphi 0, %s69
      %s71 = sphi 0, %s69
      %s72 = sphi 0, %s71
      %s86 = sphi 0, %s72
      %s90 = sphi 0, %s90
      %s92 = sphi 0, %s90
      %s93 = sphi 0, %s92
      %s107 = sphi 0, %s93
      %s111 = sphi 0, %s111
      %s113 = sphi 0, %s111
      %s114 = sphi 0, %s113
      %s128 = sphi 0, %s114
      %s134 = sphi 0, %s136
      %s137 = sphi 0, %s134
      %s138 = sphi 0, %s137
      %s154 = sphi 0, %s138
    $region4: #{tpu_custom_call.1} parent=1 // loop_header_branch
      %17 = sbr.rel (%p15) target = $region8
    $region5: #{tpu_custom_call.1} parent=1 // loop_body
      %s19 = ssub.s32 %s14, 1
      %s20 = ssub.s32 %s14, 2
      %s21 = sadd.s32 %s14, 1
      %s22 = ssub.s32 %s14, %s21
      %p23 = scmp.eq.s32.totalorder %s22, 0
      %s25 = sadd.s32 %s24, 1
      %s26 = scalar_select %p23, %s24, %s25
      %p29 = pneg %p23
      %p30 = scmp.eq.s32.totalorder %s14, 1
      %p31 = por %p29, %p30
      %p32 = scmp.ne.s32.totalorder %s24, %s27
      %p33 = scmp.eq.s32.totalorder %s14, 0
      %p34 = por %p32, %p33
      %p35 = scmp.ne.s32.totalorder %s24, %s27
      %p36 = scmp.eq.s32.totalorder %s19, 1
      %p37 = por %p35, %p36
      %p38 = scmp.ne.s32.totalorder %s27, %s28
      %p39 = scmp.eq.s32.totalorder %s19, 0
      %p40 = por %p38, %p39
      %p41 = scmp.ne.s32.totalorder %s27, %s28
      %p42 = scmp.eq.s32.totalorder %s20, 1
      %p43 = por %p41, %p42
      %p45 = scmp.ne.s32.totalorder %s28, %s44
      %p46 = scmp.eq.s32.totalorder %s20, 0
      %p47 = por %p45, %p46
      %s49 = sadd.s32 %s48, 1
      %p52 = scmp.eq.s32.totalorder %s14, 1
      %p53 = scmp.ne.s32.totalorder %s48, %s50
      %p54 = scmp.eq.s32.totalorder %s14, 0
      %p55 = por %p53, %p54
      %p56 = scmp.ne.s32.totalorder %s48, %s50
      %p57 = scmp.eq.s32.totalorder %s19, 1
      %p58 = por %p56, %p57
      %p59 = scmp.ne.s32.totalorder %s50, %s51
      %p60 = scmp.eq.s32.totalorder %s19, 0
      %p61 = por %p59, %p60
      %p62 = scmp.ne.s32.totalorder %s50, %s51
      %p63 = scmp.eq.s32.totalorder %s20, 1
      %p64 = por %p62, %p63
      %p66 = scmp.ne.s32.totalorder %s51, %s65
      %p67 = scmp.eq.s32.totalorder %s20, 0
      %p68 = por %p66, %p67
      %s70 = sadd.s32 %s69, 1
      %p73 = scmp.eq.s32.totalorder %s14, 1
      %p74 = scmp.ne.s32.totalorder %s69, %s71
      %p75 = scmp.eq.s32.totalorder %s14, 0
      %p76 = por %p74, %p75
      %p77 = scmp.ne.s32.totalorder %s69, %s71
      %p78 = scmp.eq.s32.totalorder %s19, 1
      %p79 = por %p77, %p78
      %p80 = scmp.ne.s32.totalorder %s71, %s72
      %p81 = scmp.eq.s32.totalorder %s19, 0
      %p82 = por %p80, %p81
      %p83 = scmp.ne.s32.totalorder %s71, %s72
      %p84 = scmp.eq.s32.totalorder %s20, 1
      %p85 = por %p83, %p84
      %p87 = scmp.ne.s32.totalorder %s72, %s86
      %p88 = scmp.eq.s32.totalorder %s20, 0
      %p89 = por %p87, %p88
      %s91 = sadd.s32 %s90, 1
      %p94 = scmp.eq.s32.totalorder %s14, 1
      %p95 = scmp.ne.s32.totalorder %s90, %s92
      %p96 = scmp.eq.s32.totalorder %s14, 0
      %p97 = por %p95, %p96
      %p98 = scmp.ne.s32.totalorder %s90, %s92
      %p99 = scmp.eq.s32.totalorder %s19, 1
      %p100 = por %p98, %p99
      %p101 = scmp.ne.s32.totalorder %s92, %s93
      %p102 = scmp.eq.s32.totalorder %s19, 0
      %p103 = por %p101, %p102
      %p104 = scmp.ne.s32.totalorder %s92, %s93
      %p105 = scmp.eq.s32.totalorder %s20, 1
      %p106 = por %p104, %p105
      %p108 = scmp.ne.s32.totalorder %s93, %s107
      %p109 = scmp.eq.s32.totalorder %s20, 0
      %p110 = por %p108, %p109
      %s112 = sadd.s32 %s111, 1
      %p115 = scmp.eq.s32.totalorder %s14, 1
      %p116 = scmp.ne.s32.totalorder %s111, %s113
      %p117 = scmp.eq.s32.totalorder %s14, 0
      %p118 = por %p116, %p117
      %p119 = scmp.ne.s32.totalorder %s111, %s113
      %p120 = scmp.eq.s32.totalorder %s19, 1
      %p121 = por %p119, %p120
      %p122 = scmp.ne.s32.totalorder %s113, %s114
      %p123 = scmp.eq.s32.totalorder %s19, 0
      %p124 = por %p122, %p123
      %p125 = scmp.ne.s32.totalorder %s113, %s114
      %p126 = scmp.eq.s32.totalorder %s20, 1
      %p127 = por %p125, %p126
      %p129 = scmp.ne.s32.totalorder %s114, %s128
      %p130 = scmp.eq.s32.totalorder %s20, 0
      %p131 = por %p129, %p130
      %s132 = ssub.s32 %s14, %s21
      %p133 = scmp.eq.s32.totalorder %s132, 0
      %s135 = sadd.s32 %s134, 1
      %s136 = scalar_select %p133, %s134, %s135
      %p139 = pneg %p133
      %p140 = scmp.eq.s32.totalorder %s14, 1
      %p141 = por %p139, %p140
      %p142 = scmp.ne.s32.totalorder %s134, %s137
      %p143 = scmp.eq.s32.totalorder %s14, 0
      %p144 = por %p142, %p143
      %p145 = scmp.ne.s32.totalorder %s134, %s137
      %p146 = scmp.eq.s32.totalorder %s19, 1
      %p147 = por %p145, %p146
      %p148 = scmp.ne.s32.totalorder %s137, %s138
      %p149 = scmp.eq.s32.totalorder %s19, 0
      %p150 = por %p148, %p149
      %p151 = scmp.ne.s32.totalorder %s137, %s138
      %p152 = scmp.eq.s32.totalorder %s20, 1
      %p153 = por %p151, %p152
      %p155 = scmp.ne.s32.totalorder %s138, %s154
      %p156 = scmp.eq.s32.totalorder %s20, 0
      %p157 = por %p155, %p156
      %p158 = scmp.le.s32.totalorder 1, %s14
      %p159 = scmp.lt.s32.totalorder %s14, 3
      %p160 = pnand %p158, %p159
      %p161 = pneg %p160
      // Predicated region
      $region9: #{tpu_custom_call.1} parent=5 // pred_check
        _
      $region10: #{tpu_custom_call.1} parent=5 // pred_check_branch
        %163 = sbr.rel (%p160) target = $region12
      $region11: #{tpu_custom_call.1} parent=5 // pred_region
        %s164 = ssub.s32 %s14, 1
        // Predicated region
        $region13: #{tpu_custom_call.1} parent=11 // pred_check
          %p165 = pneg %p61
        $region14: #{tpu_custom_call.1} parent=11 // pred_check_branch
          %167 = sbr.rel (%p165) target = $region16
        $region15: #{tpu_custom_call.1} parent=11 // pred_region
          _
        $region16: #{tpu_custom_call.1} parent=11 // pred_fallthru
          _
        // Predicated region
        $region17: #{tpu_custom_call.1} parent=11 // pred_check
          %p168 = pneg %p82
        $region18: #{tpu_custom_call.1} parent=11 // pred_check_branch
          %170 = sbr.rel (%p168) target = $region20
        $region19: #{tpu_custom_call.1} parent=11 // pred_region
          _
        $region20: #{tpu_custom_call.1} parent=11 // pred_fallthru
          _
        // Predicated region
        $region21: #{tpu_custom_call.1} parent=11 // pred_check
          %p171 = pneg %p103
        $region22: #{tpu_custom_call.1} parent=11 // pred_check_branch
          %173 = sbr.rel (%p171) target = $region24
        $region23: #{tpu_custom_call.1} parent=11 // pred_region
          _
        $region24: #{tpu_custom_call.1} parent=11 // pred_fallthru
          _
        // Predicated region
        $region25: #{tpu_custom_call.1} parent=11 // pred_check
          %p174 = pneg %p124
        $region26: #{tpu_custom_call.1} parent=11 // pred_check_branch
          %176 = sbr.rel (%p174) target = $region28
        $region27: #{tpu_custom_call.1} parent=11 // pred_region
          _
        $region28: #{tpu_custom_call.1} parent=11 // pred_fallthru
          _
      $region12: #{tpu_custom_call.1} parent=5 // pred_fallthru
        _
      %p177 = scmp.lt.s32.totalorder %s14, 2
      // Predicated region
      $region29: #{tpu_custom_call.1} parent=5 // pred_check
        %p178 = pneg %p177
      $region30: #{tpu_custom_call.1} parent=5 // pred_check_branch
        %180 = sbr.rel (%p178) target = $region32
      $region31: #{tpu_custom_call.1} parent=5 // pred_region
        // Predicated region
        $region33: #{tpu_custom_call.1} parent=31 // pred_check
          %p181 = pneg %p34
        $region34: #{tpu_custom_call.1} parent=31 // pred_check_branch
          %183 = sbr.rel (%p181) target = $region36
        $region35: #{tpu_custom_call.1} parent=31 // pred_region
          %s184 = smul.u32 2, %s14
          %p185 = scmp.lt.s32.totalorder %s184, 3
          %s186 = scalar_select %p185, %s184, 3
          %s187 = smul.addr %s186, 2
          %s188 = scalar_lea.vmem %s0, %s187
          %s189 = smul.u32 2, %s14
        $region36: #{tpu_custom_call.1} parent=31 // pred_fallthru
          _
      $region32: #{tpu_custom_call.1} parent=5 // pred_fallthru
        _
      %p190 = scmp.le.s32.totalorder 1, %s14
      %p191 = scmp.lt.s32.totalorder %s14, 3
      %p192 = pnand %p190, %p191
      %p193 = pneg %p192
      // Predicated region
      $region37: #{tpu_custom_call.1} parent=5 // pred_check
        _
      $region38: #{tpu_custom_call.1} parent=5 // pred_check_branch
        %195 = sbr.rel (%p192) target = $region40
      $region39: #{tpu_custom_call.1} parent=5 // pred_region
        %s196 = ssub.s32 %s14, 1
        %s197 = smul.u32 2, %s19
        %p198 = scmp.lt.s32.totalorder %s197, 3
        %s199 = scalar_select %p198, %s197, 3
        %s200 = smul.addr %s199, 2
        %s201 = scalar_lea.vmem %s0, %s200
        %p202 = pneg %p40
        %p203 = pneg %p37
        %p204 = pneg %p61
        %p205 = pneg %p58
        %p206 = pneg %p82
        %p207 = pneg %p79
        %p208 = pneg %p103
        %p209 = pneg %p100
        %p210 = pneg %p124
        %p211 = pneg %p121
        %p212 = pneg %p150
        %p213 = pneg %p147
        %s214 = sand.u32 %s137, 1
        %s215 = scalar_lea.sflag [#allocation3], %s214
        %s216 = sand.u32 %s137, 1
        %s217 = smul.addr %s216, 2
        %s218 = scalar_lea.vmem [#allocation2], %s217
        %s219 = smul.u32 2, %s19
        %p220 = scmp.lt.s32.totalorder %s219, 3
        %s221 = scalar_select %p220, %s219, 3
        %s222 = smul.addr %s221, 2
        %s223 = scalar_lea.vmem %s0, %s222
        %s224 = smul.u32 2, %s19
        %s225 = smul.u32 2, %s19
        %v226 = vld [vmem:[%s223] sm:$0xf]
        %v227 = vmul.f32 %v226, %v226
        %v228 = vmul.f32 %v227, %v226
        %v229 = vmul.f32 %v228, %v226
        %v232 = vunpack.c.l.s4 1983009808
        %v233 = vunpack.c.0.s8 %v232
        %v234 = vlaneseq
        %v235 = vshrl.u32 %v234, 7
        %v236 = vsub.s32 %v233, %v235
        %v237 = vrot.slane %v226, %v236
        %v238 = vcombine.high %v237, %v237
        %v242 = vcombine.low %v227, %v227
        %v244 = vunpack.c.l.s4 1983009808
        %v245 = vunpack.c.0.s8 %v244
        %v246 = vlaneseq
        %v247 = vshrl.u32 %v246, 7
        %v248 = vsub.s32 %v245, %v247
        %v249 = vrot.slane %v242, %v248
        %v250 = vcombine.high %v249, %v249
        %v255 = vunpack.c.l.s4 1983009808
        %v256 = vunpack.c.0.s8 %v255
        %v257 = vlaneseq
        %v258 = vshrl.u32 %v257, 7
        %v259 = vsub.s32 %v256, %v258
        %v260 = vrot.slane %v228, %v259
        %v261 = vcombine.low %v260, %v260
        %v265 = vcombine.low %v229, %v229
        %v267 = vunpack.c.l.s4 1983009808
        %v268 = vunpack.c.0.s8 %v267
        %v269 = vlaneseq
        %v270 = vshrl.u32 %v269, 7
        %v271 = vsub.s32 %v268, %v270
        %v272 = vrot.slane %v265, %v271
        %v273 = vcombine.low %v272, %v272
        %vm276 = vcmask 1041408
        %v277 = vsel %vm276, %v237, %v249
        %v278 = vsel %vm276, %v238, %v250
        %vm279 = vcmask 1043456
        %v280 = vsel %vm279, %v277, %v261
        %v281 = vsel %vm279, %v278, %v260
        %vm282 = vcmask 1045504
        %v283 = vsel %vm282, %v280, %v273
        %v284 = vsel %vm282, %v281, %v272
        %v285 = vld [vmem:[%s1] sm:$0xff]
        %v286 = vld [vmem:[%s1 + $0x8] sm:$0xff]
        %v287 = vld [vmem:[%s1 + $0x10] sm:$0xff]
        %v288 = vld [vmem:[%s1 + $0x18] sm:$0xff]
        %v289 = vld [vmem:[%s1 + $0x20] sm:$0xff]
        %v290 = vld [vmem:[%s1 + $0x28] sm:$0xff]
        %v291 = vld [vmem:[%s1 + $0x30] sm:$0xff]
        %v292 = vld [vmem:[%s1 + $0x38] sm:$0xff]
        %v293 = vld [vmem:[%s1 + $0x40] sm:$0xff]
        %v294 = vld [vmem:[%s1 + $0x48] sm:$0xff]
        %v295 = vld [vmem:[%s1 + $0x50] sm:$0xff]
        %v296 = vld [vmem:[%s1 + $0x58] sm:$0xff]
        %v297 = vld [vmem:[%s1 + $0x60] sm:$0xff]
        %v298 = vld [vmem:[%s1 + $0x68] sm:$0xff]
        %v299 = vld [vmem:[%s1 + $0x70] sm:$0xff]
        %v300 = vld [vmem:[%s1 + $0x78] sm:$0xff]
        %v301 = vld [vmem:[%s1 + $0x80] sm:$0x1]
        %vm302 = vcmask 72704
        %v304 = vsel %vm302, %v285, 0
        %v307 = vsel %vm302, %v286, 0
        %v310 = vsel %vm302, %v287, 0
        %v313 = vsel %vm302, %v288, 0
        %v316 = vsel %vm302, %v289, 0
        %v319 = vsel %vm302, %v290, 0
        %v322 = vsel %vm302, %v291, 0
        %v325 = vsel %vm302, %v292, 0
        %v328 = vsel %vm302, %v293, 0
        %v331 = vsel %vm302, %v294, 0
        %v334 = vsel %vm302, %v295, 0
        %v337 = vsel %vm302, %v296, 0
        %v340 = vsel %vm302, %v297, 0
        %v343 = vsel %vm302, %v298, 0
        %v346 = vsel %vm302, %v299, 0
        %v349 = vsel %vm302, %v300, 0
        %v352 = vsel %vm302, %v301, 0
        %vm354 = vcmask 1040384
        %v356 = vsel %vm354, 1.0, 0
        %358 = vmatprep.subr.mxu0 %v284
        %359 = vmatpush1.msra.mxu0 %v283
        %360 = vmatprep.subr.mxu0 %v356
        %361 = vmatpush1.msra.mxu0 %v356
        %362 = vmatprep.subr.mxu0 0.0
        %363 = vmatpush1.msra.mxu0 0.0
        %364 = vmatprep.subr.mxu0 0.0
        %365 = vmatpush1.msra.mxu0 0.0
        %366 = vmatprep.subr.mxu0 0.0
        %367 = vmatpush1.msra.mxu0 0.0
        %368 = vmatprep.subr.mxu0 0.0
        %369 = vmatpush1.msra.mxu0 0.0
        %370 = vmatprep.subr.mxu0 0.0
        %371 = vmatpush1.msra.mxu0 0.0
        %372 = vmatprep.subr.mxu0 0.0
        %373 = vmatpush1.msra.mxu0 0.0
        %374 = vmatprep.subr.mxu0 0.0
        %375 = vmatpush1.msra.mxu0 0.0
        %376 = vmatprep.subr.mxu0 0.0
        %377 = vmatpush1.msra.mxu0 0.0
        %378 = vmatprep.subr.mxu0 0.0
        %379 = vmatpush1.msra.mxu0 0.0
        %380 = vmatprep.subr.mxu0 0.0
        %381 = vmatpush1.msra.mxu0 0.0
        %382 = vmatprep.subr.mxu0 0.0
        %383 = vmatpush1.msra.mxu0 0.0
        %384 = vmatprep.subr.mxu0 0.0
        %385 = vmatpush1.msra.mxu0 0.0
        %386 = vmatprep.subr.mxu0 0.0
        %387 = vmatpush1.msra.mxu0 0.0
        %388 = vmatprep.subr.mxu0 0.0
        %389 = vmatpush1.msra.mxu0 0.0
        %390 = vmatprep.subr.mxu0 0.0
        %391 = vmatpush1.msra.mxu0 0.0
        %392 = vmatprep.subr.mxu0 0.0
        %393 = vmatpush1.msra.mxu0 0.0
        %394 = vmatprep.subr.mxu0 0.0
        %395 = vmatpush1.msra.mxu0 0.0
        %396 = vmatprep.subr.mxu0 0.0
        %397 = vmatpush1.msra.mxu0 0.0
        %398 = vmatprep.subr.mxu0 0.0
        %399 = vmatpush1.msra.mxu0 0.0
        %400 = vmatprep.subr.mxu0 0.0
        %401 = vmatpush1.msra.mxu0 0.0
        %402 = vmatprep.subr.mxu0 0.0
        %403 = vmatpush1.msra.mxu0 0.0
        %404 = vmatprep.subr.mxu0 0.0
        %405 = vmatpush1.msra.mxu0 0.0
        %406 = vmatprep.subr.mxu0 0.0
        %407 = vmatpush1.msra.mxu0 0.0
        %408 = vmatprep.subr.mxu0 0.0
        %409 = vmatpush1.msra.mxu0 0.0
        %410 = vmatprep.subr.mxu0 0.0
        %411 = vmatpush1.msra.mxu0 0.0
        %412 = vmatprep.subr.mxu0 0.0
        %413 = vmatpush1.msra.mxu0 0.0
        %414 = vmatprep.subr.mxu0 0.0
        %415 = vmatpush1.msra.mxu0 0.0
        %416 = vmatprep.subr.mxu0 0.0
        %417 = vmatpush1.msra.mxu0 0.0
        %418 = vmatprep.subr.mxu0 0.0
        %419 = vmatpush1.msra.mxu0 0.0
        %420 = vmatprep.subr.mxu0 0.0
        %421 = vmatpush1.msra.mxu0 0.0
        %422 = vmatprep.mubr.f32.mxu0 0.0
        %423 = vmatmul.mubr.f32.gmra.mrb[0].mxu0 %v304
        %v424 = vpop.f32.mrb[0].mxu0
        %v425 = vadd.f32 0.0, %v424
        %v426 = vpop.f32.mrb[0].mxu0
        %v427 = vadd.f32 0.0, %v426
        %428 = vmatprep.mubr.f32.mxu0 0.0
        %429 = vmatmul.mubr.f32.gmra.mrb[0].mxu0 %v307
        %v430 = vpop.f32.mrb[0].mxu0
        %v431 = vadd.f32 0.0, %v430
        %v432 = vpop.f32.mrb[0].mxu0
        %v433 = vadd.f32 0.0, %v432
        %434 = vmatprep.mubr.f32.mxu0 0.0
        %435 = vmatmul.mubr.f32.gmra.mrb[0].mxu0 %v310
        %v436 = vpop.f32.mrb[0].mxu0
        %v437 = vadd.f32 0.0, %v436
        %v438 = vpop.f32.mrb[0].mxu0
        %v439 = vadd.f32 0.0, %v438
        %440 = vmatprep.mubr.f32.mxu0 0.0
        %441 = vmatmul.mubr.f32.gmra.mrb[0].mxu0 %v313
        %v442 = vpop.f32.mrb[0].mxu0
        %v443 = vadd.f32 0.0, %v442
        %v444 = vpop.f32.mrb[0].mxu0
        %v445 = vadd.f32 0.0, %v444
        %446 = vmatprep.mubr.f32.mxu0 0.0
        %447 = vmatmul.mubr.f32.gmra.mrb[0].mxu0 %v316
        %v448 = vpop.f32.mrb[0].mxu0
        %v449 = vadd.f32 0.0, %v448
        %v450 = vpop.f32.mrb[0].mxu0
        %v451 = vadd.f32 0.0, %v450
        %452 = vmatprep.mubr.f32.mxu0 0.0
        %453 = vmatmul.mubr.f32.gmra.mrb[0].mxu0 %v319
        %v454 = vpop.f32.mrb[0].mxu0
        %v455 = vadd.f32 0.0, %v454
        %v456 = vpop.f32.mrb[0].mxu0
        %v457 = vadd.f32 0.0, %v456
        %458 = vmatprep.mubr.f32.mxu0 0.0
        %459 = vmatmul.mubr.f32.gmra.mrb[0].mxu0 %v322
        %v460 = vpop.f32.mrb[0].mxu0
        %v461 = vadd.f32 0.0, %v460
        %v462 = vpop.f32.mrb[0].mxu0
        %v463 = vadd.f32 0.0, %v462
        %464 = vmatprep.mubr.f32.mxu0 0.0
        %465 = vmatmul.mubr.f32.gmra.mrb[0].mxu0 %v325
        %v466 = vpop.f32.mrb[0].mxu0
        %v467 = vadd.f32 0.0, %v466
        %v468 = vpop.f32.mrb[0].mxu0
        %v469 = vadd.f32 0.0, %v468
        %470 = vmatprep.mubr.f32.mxu0 0.0
        %471 = vmatmul.mubr.f32.gmra.mrb[0].mxu0 %v328
        %v472 = vpop.f32.mrb[0].mxu0
        %v473 = vadd.f32 0.0, %v472
        %v474 = vpop.f32.mrb[0].mxu0
        %v475 = vadd.f32 0.0, %v474
        %476 = vmatprep.mubr.f32.mxu0 0.0
        %477 = vmatmul.mubr.f32.gmra.mrb[0].mxu0 %v331
        %v478 = vpop.f32.mrb[0].mxu0
        %v479 = vadd.f32 0.0, %v478
        %v480 = vpop.f32.mrb[0].mxu0
        %v481 = vadd.f32 0.0, %v480
        %482 = vmatprep.mubr.f32.mxu0 0.0
        %483 = vmatmul.mubr.f32.gmra.mrb[0].mxu0 %v334
        %v484 = vpop.f32.mrb[0].mxu0
        %v485 = vadd.f32 0.0, %v484
        %v486 = vpop.f32.mrb[0].mxu0
        %v487 = vadd.f32 0.0, %v486
        %488 = vmatprep.mubr.f32.mxu0 0.0
        %489 = vmatmul.mubr.f32.gmra.mrb[0].mxu0 %v337
        %v490 = vpop.f32.mrb[0].mxu0
        %v491 = vadd.f32 0.0, %v490
        %v492 = vpop.f32.mrb[0].mxu0
        %v493 = vadd.f32 0.0, %v492
        %494 = vmatprep.mubr.f32.mxu0 0.0
        %495 = vmatmul.mubr.f32.gmra.mrb[0].mxu0 %v340
        %v496 = vpop.f32.mrb[0].mxu0
        %v497 = vadd.f32 0.0, %v496
        %v498 = vpop.f32.mrb[0].mxu0
        %v499 = vadd.f32 0.0, %v498
        %500 = vmatprep.mubr.f32.mxu0 0.0
        %501 = vmatmul.mubr.f32.gmra.mrb[0].mxu0 %v343
        %v502 = vpop.f32.mrb[0].mxu0
        %v503 = vadd.f32 0.0, %v502
        %v504 = vpop.f32.mrb[0].mxu0
        %v505 = vadd.f32 0.0, %v504
        %506 = vmatprep.mubr.f32.mxu0 0.0
        %507 = vmatmul.mubr.f32.gmra.mrb[0].mxu0 %v346
        %v508 = vpop.f32.mrb[0].mxu0
        %v509 = vadd.f32 0.0, %v508
        %v510 = vpop.f32.mrb[0].mxu0
        %v511 = vadd.f32 0.0, %v510
        %512 = vmatprep.mubr.f32.mxu0 0.0
        %513 = vmatmul.mubr.f32.gmra.mrb[0].mxu0 %v349
        %v514 = vpop.f32.mrb[0].mxu0
        %v515 = vadd.f32 0.0, %v514
        %v516 = vpop.f32.mrb[0].mxu0
        %v517 = vadd.f32 0.0, %v516
        %518 = vmatprep.mubr.f32.mxu0 0.0
        %519 = vmatmul.mubr.f32.gmra.mrb[0].mxu0 %v352
        %v520 = vpop.f32.mrb[0].mxu0
        %v521 = vadd.f32 0.0, %v520
        %v522 = vpop.f32.mrb[0].mxu0
        %v523 = vadd.f32 0.0, %v522
        %524 = vdwg.mxu0
        %v525 = vld [vmem:[%s2] sm:$0xff]
        %v526 = vld [vmem:[%s2 + $0x8] sm:$0xff]
        %v527 = vld [vmem:[%s2 + $0x10] sm:$0xff]
        %v528 = vld [vmem:[%s2 + $0x18] sm:$0xff]
        %vm529 = vcmask 261120
        %v531 = vsel %vm529, %v525, 0
        %v534 = vsel %vm529, %v526, 0
        %v537 = vsel %vm529, %v527, 0
        %v540 = vsel %vm529, %v528, 0
        %542 = vmatprep.subr.mxu0 %v427
        %543 = vmatpush1.msra.mxu0 %v425
        %544 = vmatprep.subr.mxu0 %v433
        %545 = vmatpush1.msra.mxu0 %v431
        %546 = vmatprep.subr.mxu0 %v439
        %547 = vmatpush1.msra.mxu0 %v437
        %548 = vmatprep.subr.mxu0 %v445
        %549 = vmatpush1.msra.mxu0 %v443
        %550 = vmatprep.subr.mxu0 0.0
        %551 = vmatpush1.msra.mxu0 0.0
        %552 = vmatprep.subr.mxu0 0.0
        %553 = vmatpush1.msra.mxu0 0.0
        %554 = vmatprep.subr.mxu0 0.0
        %555 = vmatpush1.msra.mxu0 0.0
        %556 = vmatprep.subr.mxu0 0.0
        %557 = vmatpush1.msra.mxu0 0.0
        %558 = vmatprep.subr.mxu0 0.0
        %559 = vmatpush1.msra.mxu0 0.0
        %560 = vmatprep.subr.mxu0 0.0
        %561 = vmatpush1.msra.mxu0 0.0
        %562 = vmatprep.subr.mxu0 0.0
        %563 = vmatpush1.msra.mxu0 0.0
        %564 = vmatprep.subr.mxu0 0.0
        %565 = vmatpush1.msra.mxu0 0.0
        %566 = vmatprep.subr.mxu0 0.0
        %567 = vmatpush1.msra.mxu0 0.0
        %568 = vmatprep.subr.mxu0 0.0
        %569 = vmatpush1.msra.mxu0 0.0
        %570 = vmatprep.subr.mxu0 0.0
        %571 = vmatpush1.msra.mxu0 0.0
        %572 = vmatprep.subr.mxu0 0.0
        %573 = vmatpush1.msra.mxu0 0.0
        %574 = vmatprep.subr.mxu0 0.0
        %575 = vmatpush1.msra.mxu0 0.0
        %576 = vmatprep.subr.mxu0 0.0
        %577 = vmatpush1.msra.mxu0 0.0
        %578 = vmatprep.subr.mxu0 0.0
        %579 = vmatpush1.msra.mxu0 0.0
        %580 = vmatprep.subr.mxu0 0.0
        %581 = vmatpush1.msra.mxu0 0.0
        %582 = vmatprep.subr.mxu0 0.0
        %583 = vmatpush1.msra.mxu0 0.0
        %584 = vmatprep.subr.mxu0 0.0
        %585 = vmatpush1.msra.mxu0 0.0
        %586 = vmatprep.subr.mxu0 0.0
        %587 = vmatpush1.msra.mxu0 0.0
        %588 = vmatprep.subr.mxu0 0.0
        %589 = vmatpush1.msra.mxu0 0.0
        %590 = vmatprep.subr.mxu0 0.0
        %591 = vmatpush1.msra.mxu0 0.0
        %592 = vmatprep.subr.mxu0 0.0
        %593 = vmatpush1.msra.mxu0 0.0
        %594 = vmatprep.subr.mxu0 0.0
        %595 = vmatpush1.msra.mxu0 0.0
        %596 = vmatprep.subr.mxu0 0.0
        %597 = vmatpush1.msra.mxu0 0.0
        %598 = vmatprep.subr.mxu0 0.0
        %599 = vmatpush1.msra.mxu0 0.0
        %600 = vmatprep.subr.mxu0 0.0
        %601 = vmatpush1.msra.mxu0 0.0
        %602 = vmatprep.subr.mxu0 0.0
        %603 = vmatpush1.msra.mxu0 0.0
        %604 = vmatprep.subr.mxu0 0.0
        %605 = vmatpush1.msra.mxu0 0.0
        %606 = vmatprep.mubr.f32.mxu0 0.0
        %607 = vmatmul.mubr.f32.gmra.mrb[0].mxu0 %v531
        %v608 = vpop.f32.mrb[0].mxu0
        %v609 = vadd.f32 0.0, %v608
        %v610 = vpop.f32.mrb[0].mxu0
        %v611 = vadd.f32 0.0, %v610
        %612 = vmatprep.mubr.f32.mxu0 0.0
        %613 = vmatmul.mubr.f32.gmra.mrb[0].mxu0 %v534
        %v614 = vpop.f32.mrb[0].mxu0
        %v615 = vadd.f32 0.0, %v614
        %v616 = vpop.f32.mrb[0].mxu0
        %v617 = vadd.f32 0.0, %v616
        %618 = vmatprep.mubr.f32.mxu0 0.0
        %619 = vmatmul.mubr.f32.gmra.mrb[0].mxu0 %v537
        %v620 = vpop.f32.mrb[0].mxu0
        %v621 = vadd.f32 0.0, %v620
        %v622 = vpop.f32.mrb[0].mxu0
        %v623 = vadd.f32 0.0, %v622
        %624 = vmatprep.mubr.f32.mxu0 0.0
        %625 = vmatmul.mubr.f32.gmra.mrb[0].mxu0 %v540
        %v626 = vpop.f32.mrb[0].mxu0
        %v627 = vadd.f32 0.0, %v626
        %v628 = vpop.f32.mrb[0].mxu0
        %v629 = vadd.f32 0.0, %v628
        %630 = vdwg.mxu0
        %v631 = vadd.f32 %v449, %v609
        %v632 = vadd.f32 %v451, %v611
        %v633 = vadd.f32 %v455, %v615
        %v634 = vadd.f32 %v457, %v617
        %v635 = vadd.f32 %v461, %v621
        %v636 = vadd.f32 %v463, %v623
        %v637 = vadd.f32 %v467, %v627
        %v638 = vadd.f32 %v469, %v629
        %vm639 = vcmp.ge.f32.partialorder %v631, 0.0
        %vm640 = vcmp.ge.f32.partialorder %v632, 0.0
        %vm641 = vcmp.ge.f32.partialorder %v633, 0.0
        %vm642 = vcmp.ge.f32.partialorder %v634, 0.0
        %vm643 = vcmp.ge.f32.partialorder %v635, 0.0
        %vm644 = vcmp.ge.f32.partialorder %v636, 0.0
        %vm645 = vcmp.ge.f32.partialorder %v637, 0.0
        %vm646 = vcmp.ge.f32.partialorder %v638, 0.0
        %v647 = vmul.f32 %v631, 0.01
        %v648 = vmul.f32 %v632, 0.01
        %v649 = vmul.f32 %v633, 0.01
        %v650 = vmul.f32 %v634, 0.01
        %v651 = vmul.f32 %v635, 0.01
        %v652 = vmul.f32 %v636, 0.01
        %v653 = vmul.f32 %v637, 0.01
        %v654 = vmul.f32 %v638, 0.01
        %v655 = vsel %vm639, %v631, %v647
        %v656 = vsel %vm640, %v632, %v648
        %v657 = vsel %vm641, %v633, %v649
        %v658 = vsel %vm642, %v634, %v650
        %v659 = vsel %vm643, %v635, %v651
        %v660 = vsel %vm644, %v636, %v652
        %v661 = vsel %vm645, %v637, %v653
        %v662 = vsel %vm646, %v638, %v654
        %v663 = vld [vmem:[%s3] sm:$0xff]
        %v664 = vld [vmem:[%s3 + $0x8] sm:$0xff]
        %v665 = vld [vmem:[%s3 + $0x10] sm:$0xff]
        %v666 = vld [vmem:[%s3 + $0x18] sm:$0xff]
        %vm667 = vcmask 523264
        %v669 = vsel %vm667, %v663, 0
        %v672 = vsel %vm667, %v664, 0
        %v675 = vsel %vm667, %v665, 0
        %v678 = vsel %vm667, %v666, 0
        %680 = vmatprep.subr.mxu0 %v427
        %681 = vmatpush1.msra.mxu0 %v425
        %682 = vmatprep.subr.mxu0 %v433
        %683 = vmatpush1.msra.mxu0 %v431
        %684 = vmatprep.subr.mxu0 %v439
        %685 = vmatpush1.msra.mxu0 %v437
        %686 = vmatprep.subr.mxu0 %v445
        %687 = vmatpush1.msra.mxu0 %v443
        %688 = vmatprep.subr.mxu0 %v656
        %689 = vmatpush1.msra.mxu0 %v655
        %690 = vmatprep.subr.mxu0 %v658
        %691 = vmatpush1.msra.mxu0 %v657
        %692 = vmatprep.subr.mxu0 %v660
        %693 = vmatpush1.msra.mxu0 %v659
        %694 = vmatprep.subr.mxu0 %v662
        %695 = vmatpush1.msra.mxu0 %v661
        %696 = vmatprep.subr.mxu0 0.0
        %697 = vmatpush1.msra.mxu0 0.0
        %698 = vmatprep.subr.mxu0 0.0
        %699 = vmatpush1.msra.mxu0 0.0
        %700 = vmatprep.subr.mxu0 0.0
        %701 = vmatpush1.msra.mxu0 0.0
        %702 = vmatprep.subr.mxu0 0.0
        %703 = vmatpush1.msra.mxu0 0.0
        %704 = vmatprep.subr.mxu0 0.0
        %705 = vmatpush1.msra.mxu0 0.0
        %706 = vmatprep.subr.mxu0 0.0
        %707 = vmatpush1.msra.mxu0 0.0
        %708 = vmatprep.subr.mxu0 0.0
        %709 = vmatpush1.msra.mxu0 0.0
        %710 = vmatprep.subr.mxu0 0.0
        %711 = vmatpush1.msra.mxu0 0.0
        %712 = vmatprep.subr.mxu0 0.0
        %713 = vmatpush1.msra.mxu0 0.0
        %714 = vmatprep.subr.mxu0 0.0
        %715 = vmatpush1.msra.mxu0 0.0
        %716 = vmatprep.subr.mxu0 0.0
        %717 = vmatpush1.msra.mxu0 0.0
        %718 = vmatprep.subr.mxu0 0.0
        %719 = vmatpush1.msra.mxu0 0.0
        %720 = vmatprep.subr.mxu0 0.0
        %721 = vmatpush1.msra.mxu0 0.0
        %722 = vmatprep.subr.mxu0 0.0
        %723 = vmatpush1.msra.mxu0 0.0
        %724 = vmatprep.subr.mxu0 0.0
        %725 = vmatpush1.msra.mxu0 0.0
        %726 = vmatprep.subr.mxu0 0.0
        %727 = vmatpush1.msra.mxu0 0.0
        %728 = vmatprep.subr.mxu0 0.0
        %729 = vmatpush1.msra.mxu0 0.0
        %730 = vmatprep.subr.mxu0 0.0
        %731 = vmatpush1.msra.mxu0 0.0
        %732 = vmatprep.subr.mxu0 0.0
        %733 = vmatpush1.msra.mxu0 0.0
        %734 = vmatprep.subr.mxu0 0.0
        %735 = vmatpush1.msra.mxu0 0.0
        %736 = vmatprep.subr.mxu0 0.0
        %737 = vmatpush1.msra.mxu0 0.0
        %738 = vmatprep.subr.mxu0 0.0
        %739 = vmatpush1.msra.mxu0 0.0
        %740 = vmatprep.subr.mxu0 0.0
        %741 = vmatpush1.msra.mxu0 0.0
        %742 = vmatprep.subr.mxu0 0.0
        %743 = vmatpush1.msra.mxu0 0.0
        %744 = vmatprep.mubr.f32.mxu0 0.0
        %745 = vmatmul.mubr.f32.gmra.mrb[0].mxu0 %v669
        %v746 = vpop.f32.mrb[0].mxu0
        %v747 = vadd.f32 0.0, %v746
        %v748 = vpop.f32.mrb[0].mxu0
        %v749 = vadd.f32 0.0, %v748
        %750 = vmatprep.mubr.f32.mxu0 0.0
        %751 = vmatmul.mubr.f32.gmra.mrb[0].mxu0 %v672
        %v752 = vpop.f32.mrb[0].mxu0
        %v753 = vadd.f32 0.0, %v752
        %v754 = vpop.f32.mrb[0].mxu0
        %v755 = vadd.f32 0.0, %v754
        %756 = vmatprep.mubr.f32.mxu0 0.0
        %757 = vmatmul.mubr.f32.gmra.mrb[0].mxu0 %v675
        %v758 = vpop.f32.mrb[0].mxu0
        %v759 = vadd.f32 0.0, %v758
        %v760 = vpop.f32.mrb[0].mxu0
        %v761 = vadd.f32 0.0, %v760
        %762 = vmatprep.mubr.f32.mxu0 0.0
        %763 = vmatmul.mubr.f32.gmra.mrb[0].mxu0 %v678
        %v764 = vpop.f32.mrb[0].mxu0
        %v765 = vadd.f32 0.0, %v764
        %v766 = vpop.f32.mrb[0].mxu0
        %v767 = vadd.f32 0.0, %v766
        %768 = vdwg.mxu0
        %v769 = vadd.f32 %v473, %v747
        %v770 = vadd.f32 %v475, %v749
        %v771 = vadd.f32 %v479, %v753
        %v772 = vadd.f32 %v481, %v755
        %v773 = vadd.f32 %v485, %v759
        %v774 = vadd.f32 %v487, %v761
        %v775 = vadd.f32 %v491, %v765
        %v776 = vadd.f32 %v493, %v767
        %vm777 = vcmp.ge.f32.partialorder %v769, 0.0
        %vm778 = vcmp.ge.f32.partialorder %v770, 0.0
        %vm779 = vcmp.ge.f32.partialorder %v771, 0.0
        %vm780 = vcmp.ge.f32.partialorder %v772, 0.0
        %vm781 = vcmp.ge.f32.partialorder %v773, 0.0
        %vm782 = vcmp.ge.f32.partialorder %v774, 0.0
        %vm783 = vcmp.ge.f32.partialorder %v775, 0.0
        %vm784 = vcmp.ge.f32.partialorder %v776, 0.0
        %v785 = vmul.f32 %v769, 0.01
        %v786 = vmul.f32 %v770, 0.01
        %v787 = vmul.f32 %v771, 0.01
        %v788 = vmul.f32 %v772, 0.01
        %v789 = vmul.f32 %v773, 0.01
        %v790 = vmul.f32 %v774, 0.01
        %v791 = vmul.f32 %v775, 0.01
        %v792 = vmul.f32 %v776, 0.01
        %v793 = vsel %vm777, %v769, %v785
        %v794 = vsel %vm778, %v770, %v786
        %v795 = vsel %vm779, %v771, %v787
        %v796 = vsel %vm780, %v772, %v788
        %v797 = vsel %vm781, %v773, %v789
        %v798 = vsel %vm782, %v774, %v790
        %v799 = vsel %vm783, %v775, %v791
        %v800 = vsel %vm784, %v776, %v792
        %s801 = scalar_lea.vmem %s3, 32
        %v802 = vld [vmem:[%s801] sm:$0xff]
        %v803 = vld [vmem:[%s801 + $0x8] sm:$0xff]
        %v804 = vld [vmem:[%s801 + $0x10] sm:$0xff]
        %v805 = vld [vmem:[%s801 + $0x18] sm:$0xff]
        %v807 = vsel %vm667, %v802, 0
        %v810 = vsel %vm667, %v803, 0
        %v813 = vsel %vm667, %v804, 0
        %v816 = vsel %vm667, %v805, 0
        %818 = vmatprep.subr.mxu0 %v656
        %819 = vmatpush1.msra.mxu0 %v655
        %820 = vmatprep.subr.mxu0 %v658
        %821 = vmatpush1.msra.mxu0 %v657
        %822 = vmatprep.subr.mxu0 %v660
        %823 = vmatpush1.msra.mxu0 %v659
        %824 = vmatprep.subr.mxu0 %v662
        %825 = vmatpush1.msra.mxu0 %v661
        %826 = vmatprep.subr.mxu0 %v794
        %827 = vmatpush1.msra.mxu0 %v793
        %828 = vmatprep.subr.mxu0 %v796
        %829 = vmatpush1.msra.mxu0 %v795
        %830 = vmatprep.subr.mxu0 %v798
        %831 = vmatpush1.msra.mxu0 %v797
        %832 = vmatprep.subr.mxu0 %v800
        %833 = vmatpush1.msra.mxu0 %v799
        %834 = vmatprep.subr.mxu0 0.0
        %835 = vmatpush1.msra.mxu0 0.0
        %836 = vmatprep.subr.mxu0 0.0
        %837 = vmatpush1.msra.mxu0 0.0
        %838 = vmatprep.subr.mxu0 0.0
        %839 = vmatpush1.msra.mxu0 0.0
        %840 = vmatprep.subr.mxu0 0.0
        %841 = vmatpush1.msra.mxu0 0.0
        %842 = vmatprep.subr.mxu0 0.0
        %843 = vmatpush1.msra.mxu0 0.0
        %844 = vmatprep.subr.mxu0 0.0
        %845 = vmatpush1.msra.mxu0 0.0
        %846 = vmatprep.subr.mxu0 0.0
        %847 = vmatpush1.msra.mxu0 0.0
        %848 = vmatprep.subr.mxu0 0.0
        %849 = vmatpush1.msra.mxu0 0.0
        %850 = vmatprep.subr.mxu0 0.0
        %851 = vmatpush1.msra.mxu0 0.0
        %852 = vmatprep.subr.mxu0 0.0
        %853 = vmatpush1.msra.mxu0 0.0
        %854 = vmatprep.subr.mxu0 0.0
        %855 = vmatpush1.msra.mxu0 0.0
        %856 = vmatprep.subr.mxu0 0.0
        %857 = vmatpush1.msra.mxu0 0.0
        %858 = vmatprep.subr.mxu0 0.0
        %859 = vmatpush1.msra.mxu0 0.0
        %860 = vmatprep.subr.mxu0 0.0
        %861 = vmatpush1.msra.mxu0 0.0
        %862 = vmatprep.subr.mxu0 0.0
        %863 = vmatpush1.msra.mxu0 0.0
        %864 = vmatprep.subr.mxu0 0.0
        %865 = vmatpush1.msra.mxu0 0.0
        %866 = vmatprep.subr.mxu0 0.0
        %867 = vmatpush1.msra.mxu0 0.0
        %868 = vmatprep.subr.mxu0 0.0
        %869 = vmatpush1.msra.mxu0 0.0
        %870 = vmatprep.subr.mxu0 0.0
        %871 = vmatpush1.msra.mxu0 0.0
        %872 = vmatprep.subr.mxu0 0.0
        %873 = vmatpush1.msra.mxu0 0.0
        %874 = vmatprep.subr.mxu0 0.0
        %875 = vmatpush1.msra.mxu0 0.0
        %876 = vmatprep.subr.mxu0 0.0
        %877 = vmatpush1.msra.mxu0 0.0
        %878 = vmatprep.subr.mxu0 0.0
        %879 = vmatpush1.msra.mxu0 0.0
        %880 = vmatprep.subr.mxu0 0.0
        %881 = vmatpush1.msra.mxu0 0.0
        %882 = vmatprep.mubr.f32.mxu0 0.0
        %883 = vmatmul.mubr.f32.gmra.mrb[0].mxu0 %v807
        %v884 = vpop.f32.mrb[0].mxu0
        %v885 = vadd.f32 0.0, %v884
        %v886 = vpop.f32.mrb[0].mxu0
        %v887 = vadd.f32 0.0, %v886
        %888 = vmatprep.mubr.f32.mxu0 0.0
        %889 = vmatmul.mubr.f32.gmra.mrb[0].mxu0 %v810
        %v890 = vpop.f32.mrb[0].mxu0
        %v891 = vadd.f32 0.0, %v890
        %v892 = vpop.f32.mrb[0].mxu0
        %v893 = vadd.f32 0.0, %v892
        %894 = vmatprep.mubr.f32.mxu0 0.0
        %895 = vmatmul.mubr.f32.gmra.mrb[0].mxu0 %v813
        %v896 = vpop.f32.mrb[0].mxu0
        %v897 = vadd.f32 0.0, %v896
        %v898 = vpop.f32.mrb[0].mxu0
        %v899 = vadd.f32 0.0, %v898
        %900 = vmatprep.mubr.f32.mxu0 0.0
        %901 = vmatmul.mubr.f32.gmra.mrb[0].mxu0 %v816
        %v902 = vpop.f32.mrb[0].mxu0
        %v903 = vadd.f32 0.0, %v902
        %v904 = vpop.f32.mrb[0].mxu0
        %v905 = vadd.f32 0.0, %v904
        %906 = vdwg.mxu0
        %v907 = vadd.f32 %v497, %v885
        %v908 = vadd.f32 %v499, %v887
        %v909 = vadd.f32 %v503, %v891
        %v910 = vadd.f32 %v505, %v893
        %v911 = vadd.f32 %v509, %v897
        %v912 = vadd.f32 %v511, %v899
        %v913 = vadd.f32 %v515, %v903
        %v914 = vadd.f32 %v517, %v905
        %vm915 = vcmp.ge.f32.partialorder %v907, 0.0
        %vm916 = vcmp.ge.f32.partialorder %v908, 0.0
        %vm917 = vcmp.ge.f32.partialorder %v909, 0.0
        %vm918 = vcmp.ge.f32.partialorder %v910, 0.0
        %vm919 = vcmp.ge.f32.partialorder %v911, 0.0
        %vm920 = vcmp.ge.f32.partialorder %v912, 0.0
        %vm921 = vcmp.ge.f32.partialorder %v913, 0.0
        %vm922 = vcmp.ge.f32.partialorder %v914, 0.0
        %v923 = vmul.f32 %v907, 0.01
        %v924 = vmul.f32 %v908, 0.01
        %v925 = vmul.f32 %v909, 0.01
        %v926 = vmul.f32 %v910, 0.01
        %v927 = vmul.f32 %v911, 0.01
        %v928 = vmul.f32 %v912, 0.01
        %v929 = vmul.f32 %v913, 0.01
        %v930 = vmul.f32 %v914, 0.01
        %v931 = vsel %vm915, %v907, %v923
        %v932 = vsel %vm916, %v908, %v924
        %v933 = vsel %vm917, %v909, %v925
        %v934 = vsel %vm918, %v910, %v926
        %v935 = vsel %vm919, %v911, %v927
        %v936 = vsel %vm920, %v912, %v928
        %v937 = vsel %vm921, %v913, %v929
        %v938 = vsel %vm922, %v914, %v930
        %v939 = vld [vmem:[%s4] sm:$0x1]
        %v941 = vsel %vm667, %v939, 0
        %943 = vmatprep.subr.mxu0 %v794
        %944 = vmatpush1.msra.mxu0 %v793
        %945 = vmatprep.subr.mxu0 %v796
        %946 = vmatpush1.msra.mxu0 %v795
        %947 = vmatprep.subr.mxu0 %v798
        %948 = vmatpush1.msra.mxu0 %v797
        %949 = vmatprep.subr.mxu0 %v800
        %950 = vmatpush1.msra.mxu0 %v799
        %951 = vmatprep.subr.mxu0 %v932
        %952 = vmatpush1.msra.mxu0 %v931
        %953 = vmatprep.subr.mxu0 %v934
        %954 = vmatpush1.msra.mxu0 %v933
        %955 = vmatprep.subr.mxu0 %v936
        %956 = vmatpush1.msra.mxu0 %v935
        %957 = vmatprep.subr.mxu0 %v938
        %958 = vmatpush1.msra.mxu0 %v937
        %959 = vmatprep.subr.mxu0 0.0
        %960 = vmatpush1.msra.mxu0 0.0
        %961 = vmatprep.subr.mxu0 0.0
        %962 = vmatpush1.msra.mxu0 0.0
        %963 = vmatprep.subr.mxu0 0.0
        %964 = vmatpush1.msra.mxu0 0.0
        %965 = vmatprep.subr.mxu0 0.0
        %966 = vmatpush1.msra.mxu0 0.0
        %967 = vmatprep.subr.mxu0 0.0
        %968 = vmatpush1.msra.mxu0 0.0
        %969 = vmatprep.subr.mxu0 0.0
        %970 = vmatpush1.msra.mxu0 0.0
        %971 = vmatprep.subr.mxu0 0.0
        %972 = vmatpush1.msra.mxu0 0.0
        %973 = vmatprep.subr.mxu0 0.0
        %974 = vmatpush1.msra.mxu0 0.0
        %975 = vmatprep.subr.mxu0 0.0
        %976 = vmatpush1.msra.mxu0 0.0
        %977 = vmatprep.subr.mxu0 0.0
        %978 = vmatpush1.msra.mxu0 0.0
        %979 = vmatprep.subr.mxu0 0.0
        %980 = vmatpush1.msra.mxu0 0.0
        %981 = vmatprep.subr.mxu0 0.0
        %982 = vmatpush1.msra.mxu0 0.0
        %983 = vmatprep.subr.mxu0 0.0
        %984 = vmatpush1.msra.mxu0 0.0
        %985 = vmatprep.subr.mxu0 0.0
        %986 = vmatpush1.msra.mxu0 0.0
        %987 = vmatprep.subr.mxu0 0.0
        %988 = vmatpush1.msra.mxu0 0.0
        %989 = vmatprep.subr.mxu0 0.0
        %990 = vmatpush1.msra.mxu0 0.0
        %991 = vmatprep.subr.mxu0 0.0
        %992 = vmatpush1.msra.mxu0 0.0
        %993 = vmatprep.subr.mxu0 0.0
        %994 = vmatpush1.msra.mxu0 0.0
        %995 = vmatprep.subr.mxu0 0.0
        %996 = vmatpush1.msra.mxu0 0.0
        %997 = vmatprep.subr.mxu0 0.0
        %998 = vmatpush1.msra.mxu0 0.0
        %999 = vmatprep.subr.mxu0 0.0
        %1000 = vmatpush1.msra.mxu0 0.0
        %1001 = vmatprep.subr.mxu0 0.0
        %1002 = vmatpush1.msra.mxu0 0.0
        %1003 = vmatprep.subr.mxu0 0.0
        %1004 = vmatpush1.msra.mxu0 0.0
        %1005 = vmatprep.subr.mxu0 0.0
        %1006 = vmatpush1.msra.mxu0 0.0
        %1007 = vmatprep.mubr.f32.mxu0 0.0
        %1008 = vmatmul.mubr.f32.gmra.mrb[0].mxu0 %v941
        %v1009 = vpop.f32.mrb[0].mxu0
        %v1010 = vadd.f32 0.0, %v1009
        %v1011 = vpop.f32.mrb[0].mxu0
        %v1012 = vadd.f32 0.0, %v1011
        %1013 = vdwg.mxu0
        %v1014 = vadd.f32 %v521, %v1010
        %v1015 = vadd.f32 %v523, %v1012
        %v1016 = vsub.f32 0.0, %v1014
        %v1017 = vsub.f32 0.0, %v1015
        %v1018 = vmul.f32 %v1016, 1.442695
        %v1019 = vpow.pop %v1018
        %v1020 = vmul.f32 %v1017, 1.442695
        %v1021 = vpow.pop %v1020
        %v1022 = vadd.f32 %v1019, 1.0
        %v1023 = vadd.f32 %v1021, 1.0
        %v1024 = vrcp.pop %v1022
        %v1025 = vrcp.pop %v1023
        %v1028 = vcombine.low %v1024, %v1025
        %v1030 = vunpack.c.l.s4 1966171168
        %v1031 = vunpack.c.0.s8 %v1030
        %v1032 = vlaneseq
        %v1033 = vshrl.u32 %v1032, 7
        %v1034 = vsub.s32 %v1031, %v1033
        %v1035 = vrot.slane %v1028, %v1034
        %v1037 = vunpack.c.l.s4 1966171168
        %v1038 = vunpack.c.0.s8 %v1037
        %v1039 = vlaneseq
        %v1040 = vshrl.u32 %v1039, 7
        %v1041 = vsub.s32 %v1038, %v1040
        %v1042 = vrot.slane %v1035, %v1041
        %v1044 = vlaneseq
        %vm1045 = vcmp.ge.s32.totalorder %v1044, 0
        %vm1046 = vcmp.lt.s32.totalorder %v1044, 256
        %vm1047 = vmand %vm1045, %vm1046
        %1048 = vst.msk [vmem:[%s218] sm:$0x3] %vm1047, %v1042
        %s1049 = sand.u32 %s137, 1
        %s1050 = scalar_lea.sflag [#allocation3], %s1049
        %s1051 = sand.u32 %s137, 1
        %s1052 = smul.addr %s1051, 2
        %s1053 = scalar_lea.vmem [#allocation2], %s1052
        // Predicated region
        $region41: #{tpu_custom_call.1} parent=39 // pred_check
          %p1054 = pneg %p147
        $region42: #{tpu_custom_call.1} parent=39 // pred_check_branch
          %1056 = sbr.rel (%p1054) target = $region44
        $region43: #{tpu_custom_call.1} parent=39 // pred_region
          %s1057 = smul.u32 2, %s19
          %s1059 = ssub.s32 32, 32
          %1060 = vsyncadd %s1050, %s1059
          %s1061 = smul.addr %s1057, 16
          %s1062 = scalar_lea.hbm %s5, %s1061
          %s1064 = sshll.u32 %s1053, 4
          %s1065 = int_to_ptr.vmem [resolvable:$true] %s1064
          %1067 = dma.vmem_to_hbm [thread:$0]  %s1065, 32, %s1062, %s1050
        $region44: #{tpu_custom_call.1} parent=39 // pred_fallthru
          _
      $region40: #{tpu_custom_call.1} parent=5 // pred_fallthru
        _
      %p1068 = scmp.le.s32.totalorder 2, %s14
      // Predicated region
      $region45: #{tpu_custom_call.1} parent=5 // pred_check
        %p1069 = pneg %p1068
      $region46: #{tpu_custom_call.1} parent=5 // pred_check_branch
        %1071 = sbr.rel (%p1069) target = $region48
      $region47: #{tpu_custom_call.1} parent=5 // pred_region
        %s1072 = ssub.s32 %s14, 2
        // Predicated region
        $region49: #{tpu_custom_call.1} parent=47 // pred_check
          %p1073 = pneg %p153
        $region50: #{tpu_custom_call.1} parent=47 // pred_check_branch
          %1075 = sbr.rel (%p1073) target = $region52
        $region51: #{tpu_custom_call.1} parent=47 // pred_region
          %s1076 = sand.u32 %s138, 1
          %s1077 = scalar_lea.sflag [#allocation3], %s1076
          %s1078 = sand.u32 %s138, 1
          %s1079 = smul.addr %s1078, 2
          %s1080 = scalar_lea.vmem [#allocation2], %s1079
          %1081 = dma.done %s1077, 32
        $region52: #{tpu_custom_call.1} parent=47 // pred_fallthru
          _
      $region48: #{tpu_custom_call.1} parent=5 // pred_fallthru
        _
    $region6: #{tpu_custom_call.1} parent=1 // loop_footer
      %s18 = sadd.s32 1, %s14
    $region7: #{tpu_custom_call.1} parent=1 // loop_footer_branch
      %13 = sbr.rel target = $region3
    $region8: #{tpu_custom_call.1} parent=1 // loop_exit
      _
    %1082 = vsyncpa [#allocation3], 1
    %s1083 = scalar_lea.sflag [#allocation3], 1
    %1084 = vsyncpa %s1083, 1

</llo_original>
